<compile_context>
chip_gen: v5e
topology: v5e:2x2
jax: 0.10.0
libtpu: 0.0.40
codegen_flags: <defaults>
</compile_context>

<pallas_src>
import functools

import jax
import jax.numpy as jnp
from jax import lax
from jax.experimental import pallas as pl
from jax.experimental.pallas import tpu as pltpu

EPS = 1e-5
F_IN, F_HID, F_OUT = 8, 4, 2
LANES = 128                      # padded batch width (lane axis)

# Offsets into the flat SMEM parameter vector (row-major flattening).
_W1_OFF = 0                          # W1 (8,4): w1[k, j] at k*4 + j
_W2_OFF = _W1_OFF + F_IN * F_HID     # W2 (4,2): w2[j, c] at 32 + j*2 + c
_G1_OFF = _W2_OFF + F_HID * F_OUT    # BN1 gamma (4)
_B1_OFF = _G1_OFF + F_HID            # BN1 beta  (4)
_G2_OFF = _B1_OFF + F_HID            # BN2 gamma (2)
_P_LEN = _G2_OFF + F_OUT             # 50 used
_P_PAD = 64                          # padded flat-param length


def _mlp_bn_softmax_kernel(p_ref, x_ref, o_ref, *, n):
    """p_ref: SMEM (64,) f32 params; x_ref: VMEM (8,128) f32; o_ref: VMEM (2,128)."""
    inv_n = 1.0 / n
    x = x_ref[...]                                         # (8, LANES)

    # Lanes >= n are zero padding added by the wrapper.
    lane = lax.broadcasted_iota(jnp.int32, (1, LANES), 1)
    valid = lane < n

    # ---- Linear(8,4) (bias cancels under BN mean-sub) + BN1 (train) + ReLU.
    # Padding lanes of hj are exactly 0 (zero input, no bias), so the
    # sum / sum-of-squares over all 128 lanes equal the sums over the batch.
    h_rows = []
    for j in range(F_HID):
        hj = p_ref[_W1_OFF + j] * x[0:1, :]
        for k in range(1, F_IN):
            hj = hj + p_ref[_W1_OFF + k * F_HID + j] * x[k:k + 1, :]
        mu = jnp.sum(hj, axis=1, keepdims=True) * inv_n
        var = jnp.maximum(
            jnp.sum(hj * hj, axis=1, keepdims=True) * inv_n - mu * mu, 0.0)
        scale = p_ref[_G1_OFF + j] * lax.rsqrt(var + EPS)  # fold gamma into scale
        hj = (hj - mu) * scale + p_ref[_B1_OFF + j]
        hj = jnp.maximum(hj, 0.0)                          # ReLU
        hj = jnp.where(valid, hj, 0.0)                     # re-zero padding lanes
        h_rows.append(hj)

    # ---- Linear(4,2) (bias dropped) + BN2 + Softmax(dim=0).
    # Softmax over the batch axis is shift-invariant per output column, so the
    # BN2 mean subtraction and beta2 are elided (mean only feeds the variance).
    out_rows = []
    for c in range(F_OUT):
        zc = p_ref[_W2_OFF + c] * h_rows[0]
        for j in range(1, F_HID):
            zc = zc + p_ref[_W2_OFF + j * F_OUT + c] * h_rows[j]
        mu = jnp.sum(zc, axis=1, keepdims=True) * inv_n
        var = jnp.maximum(
            jnp.sum(zc * zc, axis=1, keepdims=True) * inv_n - mu * mu, 0.0)
        zc = zc * (p_ref[_G2_OFF + c] * lax.rsqrt(var + EPS))
        zc = jnp.where(valid, zc, -1e30)                   # exclude padding lanes
        m = jnp.max(zc, axis=1, keepdims=True)
        e = jnp.exp(zc - m)
        out_rows.append(e / jnp.sum(e, axis=1, keepdims=True))  # exact normalize

    # Single lane-dense (2, 128) store.
    o_ref[...] = jnp.concatenate(out_rows, axis=0)


def pack_params(params):
    """Flatten kernel-relevant params into one (64,) f32 vector (SMEM operand).

    b1, b2 and beta2 are intentionally dropped (see derivation in header)."""
    w1, _b1, g1, be1, w2, _b2, g2, _be2 = params
    flat = jnp.concatenate(
        [w1.reshape(-1), w2.reshape(-1), g1, be1, g2]).astype(jnp.float32)
    assert flat.shape[0] == _P_LEN
    return jnp.pad(flat, (0, _P_PAD - _P_LEN))


def model_forward(x, packed_params):
    """x: (N, 8) float32, packed_params: (64,) f32.  Returns (N, 2) f32."""
    n, f_in = x.shape
    assert f_in == F_IN and n <= LANES  # larger N -> batch-tiled grid (see header)
    # Feature-major, lane-padded input: batch on the lane axis.
    x_fm = jnp.zeros((F_IN, LANES), jnp.float32).at[:, :n].set(
        x.T.astype(jnp.float32))
    out_fm = pl.pallas_call(
        functools.partial(_mlp_bn_softmax_kernel, n=n),
        out_shape=jax.ShapeDtypeStruct((F_OUT, LANES), jnp.float32),
        in_specs=[
            pl.BlockSpec(memory_space=pltpu.MemorySpace.SMEM),   # params (scalars)
            pl.BlockSpec(memory_space=pltpu.MemorySpace.VMEM),   # x, feature-major
        ],
        out_specs=pl.BlockSpec(memory_space=pltpu.MemorySpace.VMEM),
    )(packed_params, x_fm)
    return out_fm[:, :n].T                                  # back to (N, 2)


def init_params(key):
    """Deterministic parameter init (shapes mirror the PyTorch module)."""
    k1, k2, k3, k4 = jax.random.split(key, 4)
    w1 = jax.random.uniform(k1, (8, 4), jnp.float32, -0.35, 0.35)  # (in, out)
    b1 = jax.random.uniform(k2, (4,), jnp.float32, -0.35, 0.35)
    g1 = jnp.ones((4,), jnp.float32)      # BatchNorm1d default init
    be1 = jnp.zeros((4,), jnp.float32)
    w2 = jax.random.uniform(k3, (4, 2), jnp.float32, -0.5, 0.5)
    b2 = jax.random.uniform(k4, (2,), jnp.float32, -0.5, 0.5)
    g2 = jnp.ones((2,), jnp.float32)
    be2 = jnp.zeros((2,), jnp.float32)
    return (w1, b1, g1, be1, w2, b2, g2, be2)


def _reference_forward(x, params):
    """Pure-JAX reference of the PyTorch module (training-mode BN, softmax dim=0)."""
    w1, b1, g1, be1, w2, b2, g2, be2 = params
    h = x @ w1 + b1
    mu = h.mean(0, keepdims=True)
    var = ((h - mu) ** 2).mean(0, keepdims=True)
    h = (h - mu) / jnp.sqrt(var + EPS) * g1 + be1
    h = jnp.maximum(h, 0.0)
    z = h @ w2 + b2
    mu = z.mean(0, keepdims=True)
    var = ((z - mu) ** 2).mean(0, keepdims=True)
    z = (z - mu) / jnp.sqrt(var + EPS) * g2 + be2
    return jax.nn.softmax(z, axis=0)


if __name__ == "__main__":
    key = jax.random.PRNGKey(0)
    kx, kp = jax.random.split(key)

    params = init_params(kp)
    packed = pack_params(params)

    # Batch of 8 samples with 8 features (matches Linear(8, ...)).
    x = jax.random.normal(kx, (8, F_IN), dtype=jnp.float32)

    out = jax.block_until_ready(model_forward(x, packed))
    ref = _reference_forward(x, params)

    assert out.shape == (8, 2)
    # Softmax over dim=0 => each output column sums to 1 across the batch
    # (exact divide in-kernel, so this holds to f32 precision).
    col_sums = jnp.sum(out, axis=0)
    assert jnp.allclose(col_sums, jnp.ones_like(col_sums), atol=1e-3)
    # Match the full PyTorch-equivalent reference.
    assert jnp.allclose(out, ref, atol=2e-3, rtol=2e-3)

    print("KERNEL_OK")
</pallas_src>

<mosaic_0001>
module attributes {stable_mosaic.version = 11 : i64} {
  func.func @_mlp_bn_softmax_kernel(%arg0: memref<64xf32, #tpu.memory_space<smem>>, %arg1: memref<8x128xf32, #tpu.memory_space<vmem>>, %arg2: memref<2x128xf32, #tpu.memory_space<vmem>>) attributes {dimension_semantics = [], scalar_prefetch = 0 : i64, scratch_operands = 0 : i64, tpu.core_type = #tpu.core_type<tc>} {
    %c0 = arith.constant 0 : index
    %c0_0 = arith.constant 0 : index
    %0 = vector.load %arg1[%c0, %c0_0] : memref<8x128xf32, #tpu.memory_space<vmem>>, vector<8x128xf32>
    %1 = tpu.iota {dimensions = array<i32: 1>} : vector<1x128xi32>
    %c8_i32 = arith.constant 8 : i32
    %2 = vector.broadcast %c8_i32 : i32 to vector<1x128xi32>
    %3 = arith.cmpi slt, %1, %2 : vector<1x128xi32>
    %c0_1 = arith.constant 0 : index
    %4 = memref.load %arg0[%c0_1] : memref<64xf32, #tpu.memory_space<smem>>
    %5 = vector.extract_strided_slice %0 {offsets = [0, 0], sizes = [1, 128], strides = [1, 1]} : vector<8x128xf32> to vector<1x128xf32>
    %6 = vector.broadcast %4 : f32 to vector<1x128xf32>
    %7 = arith.mulf %6, %5 : vector<1x128xf32>
    %c4 = arith.constant 4 : index
    %8 = memref.load %arg0[%c4] : memref<64xf32, #tpu.memory_space<smem>>
    %9 = vector.extract_strided_slice %0 {offsets = [1, 0], sizes = [1, 128], strides = [1, 1]} : vector<8x128xf32> to vector<1x128xf32>
    %10 = vector.broadcast %8 : f32 to vector<1x128xf32>
    %11 = arith.mulf %10, %9 : vector<1x128xf32>
    %12 = arith.addf %7, %11 : vector<1x128xf32>
    %c8 = arith.constant 8 : index
    %13 = memref.load %arg0[%c8] : memref<64xf32, #tpu.memory_space<smem>>
    %14 = vector.extract_strided_slice %0 {offsets = [2, 0], sizes = [1, 128], strides = [1, 1]} : vector<8x128xf32> to vector<1x128xf32>
    %15 = vector.broadcast %13 : f32 to vector<1x128xf32>
    %16 = arith.mulf %15, %14 : vector<1x128xf32>
    %17 = arith.addf %12, %16 : vector<1x128xf32>
    %c12 = arith.constant 12 : index
    %18 = memref.load %arg0[%c12] : memref<64xf32, #tpu.memory_space<smem>>
    %19 = vector.extract_strided_slice %0 {offsets = [3, 0], sizes = [1, 128], strides = [1, 1]} : vector<8x128xf32> to vector<1x128xf32>
    %20 = vector.broadcast %18 : f32 to vector<1x128xf32>
    %21 = arith.mulf %20, %19 : vector<1x128xf32>
    %22 = arith.addf %17, %21 : vector<1x128xf32>
    %c16 = arith.constant 16 : index
    %23 = memref.load %arg0[%c16] : memref<64xf32, #tpu.memory_space<smem>>
    %24 = vector.extract_strided_slice %0 {offsets = [4, 0], sizes = [1, 128], strides = [1, 1]} : vector<8x128xf32> to vector<1x128xf32>
    %25 = vector.broadcast %23 : f32 to vector<1x128xf32>
    %26 = arith.mulf %25, %24 : vector<1x128xf32>
    %27 = arith.addf %22, %26 : vector<1x128xf32>
    %c20 = arith.constant 20 : index
    %28 = memref.load %arg0[%c20] : memref<64xf32, #tpu.memory_space<smem>>
    %29 = vector.extract_strided_slice %0 {offsets = [5, 0], sizes = [1, 128], strides = [1, 1]} : vector<8x128xf32> to vector<1x128xf32>
    %30 = vector.broadcast %28 : f32 to vector<1x128xf32>
    %31 = arith.mulf %30, %29 : vector<1x128xf32>
    %32 = arith.addf %27, %31 : vector<1x128xf32>
    %c24 = arith.constant 24 : index
    %33 = memref.load %arg0[%c24] : memref<64xf32, #tpu.memory_space<smem>>
    %34 = vector.extract_strided_slice %0 {offsets = [6, 0], sizes = [1, 128], strides = [1, 1]} : vector<8x128xf32> to vector<1x128xf32>
    %35 = vector.broadcast %33 : f32 to vector<1x128xf32>
    %36 = arith.mulf %35, %34 : vector<1x128xf32>
    %37 = arith.addf %32, %36 : vector<1x128xf32>
    %c28 = arith.constant 28 : index
    %38 = memref.load %arg0[%c28] : memref<64xf32, #tpu.memory_space<smem>>
    %39 = vector.extract_strided_slice %0 {offsets = [7, 0], sizes = [1, 128], strides = [1, 1]} : vector<8x128xf32> to vector<1x128xf32>
    %40 = vector.broadcast %38 : f32 to vector<1x128xf32>
    %41 = arith.mulf %40, %39 : vector<1x128xf32>
    %42 = arith.addf %37, %41 : vector<1x128xf32>
    %cst = arith.constant dense<0.000000e+00> : vector<1xf32>
    %43 = vector.multi_reduction <add>, %42, %cst [1] : vector<1x128xf32> to vector<1xf32>
    %44 = vector.shape_cast %43 : vector<1xf32> to vector<1x1xf32>
    %cst_2 = arith.constant 1.250000e-01 : f32
    %45 = vector.broadcast %cst_2 : f32 to vector<1x1xf32>
    %46 = arith.mulf %44, %45 : vector<1x1xf32>
    %47 = arith.mulf %42, %42 : vector<1x128xf32>
    %cst_3 = arith.constant dense<0.000000e+00> : vector<1xf32>
    %48 = vector.multi_reduction <add>, %47, %cst_3 [1] : vector<1x128xf32> to vector<1xf32>
    %49 = vector.shape_cast %48 : vector<1xf32> to vector<1x1xf32>
    %cst_4 = arith.constant 1.250000e-01 : f32
    %50 = vector.broadcast %cst_4 : f32 to vector<1x1xf32>
    %51 = arith.mulf %49, %50 : vector<1x1xf32>
    %52 = arith.mulf %46, %46 : vector<1x1xf32>
    %53 = arith.subf %51, %52 : vector<1x1xf32>
    %cst_5 = arith.constant 0.000000e+00 : f32
    %54 = vector.broadcast %cst_5 : f32 to vector<1x1xf32>
    %55 = arith.maximumf %53, %54 : vector<1x1xf32>
    %c40 = arith.constant 40 : index
    %56 = memref.load %arg0[%c40] : memref<64xf32, #tpu.memory_space<smem>>
    %cst_6 = arith.constant 9.99999974E-6 : f32
    %57 = vector.broadcast %cst_6 : f32 to vector<1x1xf32>
    %58 = arith.addf %55, %57 : vector<1x1xf32>
    %59 = math.rsqrt %58 : vector<1x1xf32>
    %60 = vector.broadcast %56 : f32 to vector<1x1xf32>
    %61 = arith.mulf %60, %59 : vector<1x1xf32>
    %62 = vector.broadcast %46 : vector<1x1xf32> to vector<1x128xf32>
    %63 = arith.subf %42, %62 : vector<1x128xf32>
    %64 = vector.broadcast %61 : vector<1x1xf32> to vector<1x128xf32>
    %65 = arith.mulf %63, %64 : vector<1x128xf32>
    %c44 = arith.constant 44 : index
    %66 = memref.load %arg0[%c44] : memref<64xf32, #tpu.memory_space<smem>>
    %67 = vector.broadcast %66 : f32 to vector<1x128xf32>
    %68 = arith.addf %65, %67 : vector<1x128xf32>
    %cst_7 = arith.constant 0.000000e+00 : f32
    %69 = vector.broadcast %cst_7 : f32 to vector<1x128xf32>
    %70 = arith.maximumf %68, %69 : vector<1x128xf32>
    %cst_8 = arith.constant 0.000000e+00 : f32
    %71 = vector.broadcast %cst_8 : f32 to vector<1x128xf32>
    %72 = arith.select %3, %70, %71 : vector<1x128xi1>, vector<1x128xf32>
    %c1 = arith.constant 1 : index
    %73 = memref.load %arg0[%c1] : memref<64xf32, #tpu.memory_space<smem>>
    %74 = vector.extract_strided_slice %0 {offsets = [0, 0], sizes = [1, 128], strides = [1, 1]} : vector<8x128xf32> to vector<1x128xf32>
    %75 = vector.broadcast %73 : f32 to vector<1x128xf32>
    %76 = arith.mulf %75, %74 : vector<1x128xf32>
    %c5 = arith.constant 5 : index
    %77 = memref.load %arg0[%c5] : memref<64xf32, #tpu.memory_space<smem>>
    %78 = vector.extract_strided_slice %0 {offsets = [1, 0], sizes = [1, 128], strides = [1, 1]} : vector<8x128xf32> to vector<1x128xf32>
    %79 = vector.broadcast %77 : f32 to vector<1x128xf32>
    %80 = arith.mulf %79, %78 : vector<1x128xf32>
    %81 = arith.addf %76, %80 : vector<1x128xf32>
    %c9 = arith.constant 9 : index
    %82 = memref.load %arg0[%c9] : memref<64xf32, #tpu.memory_space<smem>>
    %83 = vector.extract_strided_slice %0 {offsets = [2, 0], sizes = [1, 128], strides = [1, 1]} : vector<8x128xf32> to vector<1x128xf32>
    %84 = vector.broadcast %82 : f32 to vector<1x128xf32>
    %85 = arith.mulf %84, %83 : vector<1x128xf32>
    %86 = arith.addf %81, %85 : vector<1x128xf32>
    %c13 = arith.constant 13 : index
    %87 = memref.load %arg0[%c13] : memref<64xf32, #tpu.memory_space<smem>>
    %88 = vector.extract_strided_slice %0 {offsets = [3, 0], sizes = [1, 128], strides = [1, 1]} : vector<8x128xf32> to vector<1x128xf32>
    %89 = vector.broadcast %87 : f32 to vector<1x128xf32>
    %90 = arith.mulf %89, %88 : vector<1x128xf32>
    %91 = arith.addf %86, %90 : vector<1x128xf32>
    %c17 = arith.constant 17 : index
    %92 = memref.load %arg0[%c17] : memref<64xf32, #tpu.memory_space<smem>>
    %93 = vector.extract_strided_slice %0 {offsets = [4, 0], sizes = [1, 128], strides = [1, 1]} : vector<8x128xf32> to vector<1x128xf32>
    %94 = vector.broadcast %92 : f32 to vector<1x128xf32>
    %95 = arith.mulf %94, %93 : vector<1x128xf32>
    %96 = arith.addf %91, %95 : vector<1x128xf32>
    %c21 = arith.constant 21 : index
    %97 = memref.load %arg0[%c21] : memref<64xf32, #tpu.memory_space<smem>>
    %98 = vector.extract_strided_slice %0 {offsets = [5, 0], sizes = [1, 128], strides = [1, 1]} : vector<8x128xf32> to vector<1x128xf32>
    %99 = vector.broadcast %97 : f32 to vector<1x128xf32>
    %100 = arith.mulf %99, %98 : vector<1x128xf32>
    %101 = arith.addf %96, %100 : vector<1x128xf32>
    %c25 = arith.constant 25 : index
    %102 = memref.load %arg0[%c25] : memref<64xf32, #tpu.memory_space<smem>>
    %103 = vector.extract_strided_slice %0 {offsets = [6, 0], sizes = [1, 128], strides = [1, 1]} : vector<8x128xf32> to vector<1x128xf32>
    %104 = vector.broadcast %102 : f32 to vector<1x128xf32>
    %105 = arith.mulf %104, %103 : vector<1x128xf32>
    %106 = arith.addf %101, %105 : vector<1x128xf32>
    %c29 = arith.constant 29 : index
    %107 = memref.load %arg0[%c29] : memref<64xf32, #tpu.memory_space<smem>>
    %108 = vector.extract_strided_slice %0 {offsets = [7, 0], sizes = [1, 128], strides = [1, 1]} : vector<8x128xf32> to vector<1x128xf32>
    %109 = vector.broadcast %107 : f32 to vector<1x128xf32>
    %110 = arith.mulf %109, %108 : vector<1x128xf32>
    %111 = arith.addf %106, %110 : vector<1x128xf32>
    %cst_9 = arith.constant dense<0.000000e+00> : vector<1xf32>
    %112 = vector.multi_reduction <add>, %111, %cst_9 [1] : vector<1x128xf32> to vector<1xf32>
    %113 = vector.shape_cast %112 : vector<1xf32> to vector<1x1xf32>
    %cst_10 = arith.constant 1.250000e-01 : f32
    %114 = vector.broadcast %cst_10 : f32 to vector<1x1xf32>
    %115 = arith.mulf %113, %114 : vector<1x1xf32>
    %116 = arith.mulf %111, %111 : vector<1x128xf32>
    %cst_11 = arith.constant dense<0.000000e+00> : vector<1xf32>
    %117 = vector.multi_reduction <add>, %116, %cst_11 [1] : vector<1x128xf32> to vector<1xf32>
    %118 = vector.shape_cast %117 : vector<1xf32> to vector<1x1xf32>
    %cst_12 = arith.constant 1.250000e-01 : f32
    %119 = vector.broadcast %cst_12 : f32 to vector<1x1xf32>
    %120 = arith.mulf %118, %119 : vector<1x1xf32>
    %121 = arith.mulf %115, %115 : vector<1x1xf32>
    %122 = arith.subf %120, %121 : vector<1x1xf32>
    %cst_13 = arith.constant 0.000000e+00 : f32
    %123 = vector.broadcast %cst_13 : f32 to vector<1x1xf32>
    %124 = arith.maximumf %122, %123 : vector<1x1xf32>
    %c41 = arith.constant 41 : index
    %125 = memref.load %arg0[%c41] : memref<64xf32, #tpu.memory_space<smem>>
    %cst_14 = arith.constant 9.99999974E-6 : f32
    %126 = vector.broadcast %cst_14 : f32 to vector<1x1xf32>
    %127 = arith.addf %124, %126 : vector<1x1xf32>
    %128 = math.rsqrt %127 : vector<1x1xf32>
    %129 = vector.broadcast %125 : f32 to vector<1x1xf32>
    %130 = arith.mulf %129, %128 : vector<1x1xf32>
    %131 = vector.broadcast %115 : vector<1x1xf32> to vector<1x128xf32>
    %132 = arith.subf %111, %131 : vector<1x128xf32>
    %133 = vector.broadcast %130 : vector<1x1xf32> to vector<1x128xf32>
    %134 = arith.mulf %132, %133 : vector<1x128xf32>
    %c45 = arith.constant 45 : index
    %135 = memref.load %arg0[%c45] : memref<64xf32, #tpu.memory_space<smem>>
    %136 = vector.broadcast %135 : f32 to vector<1x128xf32>
    %137 = arith.addf %134, %136 : vector<1x128xf32>
    %cst_15 = arith.constant 0.000000e+00 : f32
    %138 = vector.broadcast %cst_15 : f32 to vector<1x128xf32>
    %139 = arith.maximumf %137, %138 : vector<1x128xf32>
    %cst_16 = arith.constant 0.000000e+00 : f32
    %140 = vector.broadcast %cst_16 : f32 to vector<1x128xf32>
    %141 = arith.select %3, %139, %140 : vector<1x128xi1>, vector<1x128xf32>
    %c2 = arith.constant 2 : index
    %142 = memref.load %arg0[%c2] : memref<64xf32, #tpu.memory_space<smem>>
    %143 = vector.extract_strided_slice %0 {offsets = [0, 0], sizes = [1, 128], strides = [1, 1]} : vector<8x128xf32> to vector<1x128xf32>
    %144 = vector.broadcast %142 : f32 to vector<1x128xf32>
    %145 = arith.mulf %144, %143 : vector<1x128xf32>
    %c6 = arith.constant 6 : index
    %146 = memref.load %arg0[%c6] : memref<64xf32, #tpu.memory_space<smem>>
    %147 = vector.extract_strided_slice %0 {offsets = [1, 0], sizes = [1, 128], strides = [1, 1]} : vector<8x128xf32> to vector<1x128xf32>
    %148 = vector.broadcast %146 : f32 to vector<1x128xf32>
    %149 = arith.mulf %148, %147 : vector<1x128xf32>
    %150 = arith.addf %145, %149 : vector<1x128xf32>
    %c10 = arith.constant 10 : index
    %151 = memref.load %arg0[%c10] : memref<64xf32, #tpu.memory_space<smem>>
    %152 = vector.extract_strided_slice %0 {offsets = [2, 0], sizes = [1, 128], strides = [1, 1]} : vector<8x128xf32> to vector<1x128xf32>
    %153 = vector.broadcast %151 : f32 to vector<1x128xf32>
    %154 = arith.mulf %153, %152 : vector<1x128xf32>
    %155 = arith.addf %150, %154 : vector<1x128xf32>
    %c14 = arith.constant 14 : index
    %156 = memref.load %arg0[%c14] : memref<64xf32, #tpu.memory_space<smem>>
    %157 = vector.extract_strided_slice %0 {offsets = [3, 0], sizes = [1, 128], strides = [1, 1]} : vector<8x128xf32> to vector<1x128xf32>
    %158 = vector.broadcast %156 : f32 to vector<1x128xf32>
    %159 = arith.mulf %158, %157 : vector<1x128xf32>
    %160 = arith.addf %155, %159 : vector<1x128xf32>
    %c18 = arith.constant 18 : index
    %161 = memref.load %arg0[%c18] : memref<64xf32, #tpu.memory_space<smem>>
    %162 = vector.extract_strided_slice %0 {offsets = [4, 0], sizes = [1, 128], strides = [1, 1]} : vector<8x128xf32> to vector<1x128xf32>
    %163 = vector.broadcast %161 : f32 to vector<1x128xf32>
    %164 = arith.mulf %163, %162 : vector<1x128xf32>
    %165 = arith.addf %160, %164 : vector<1x128xf32>
    %c22 = arith.constant 22 : index
    %166 = memref.load %arg0[%c22] : memref<64xf32, #tpu.memory_space<smem>>
    %167 = vector.extract_strided_slice %0 {offsets = [5, 0], sizes = [1, 128], strides = [1, 1]} : vector<8x128xf32> to vector<1x128xf32>
    %168 = vector.broadcast %166 : f32 to vector<1x128xf32>
    %169 = arith.mulf %168, %167 : vector<1x128xf32>
    %170 = arith.addf %165, %169 : vector<1x128xf32>
    %c26 = arith.constant 26 : index
    %171 = memref.load %arg0[%c26] : memref<64xf32, #tpu.memory_space<smem>>
    %172 = vector.extract_strided_slice %0 {offsets = [6, 0], sizes = [1, 128], strides = [1, 1]} : vector<8x128xf32> to vector<1x128xf32>
    %173 = vector.broadcast %171 : f32 to vector<1x128xf32>
    %174 = arith.mulf %173, %172 : vector<1x128xf32>
    %175 = arith.addf %170, %174 : vector<1x128xf32>
    %c30 = arith.constant 30 : index
    %176 = memref.load %arg0[%c30] : memref<64xf32, #tpu.memory_space<smem>>
    %177 = vector.extract_strided_slice %0 {offsets = [7, 0], sizes = [1, 128], strides = [1, 1]} : vector<8x128xf32> to vector<1x128xf32>
    %178 = vector.broadcast %176 : f32 to vector<1x128xf32>
    %179 = arith.mulf %178, %177 : vector<1x128xf32>
    %180 = arith.addf %175, %179 : vector<1x128xf32>
    %cst_17 = arith.constant dense<0.000000e+00> : vector<1xf32>
    %181 = vector.multi_reduction <add>, %180, %cst_17 [1] : vector<1x128xf32> to vector<1xf32>
    %182 = vector.shape_cast %181 : vector<1xf32> to vector<1x1xf32>
    %cst_18 = arith.constant 1.250000e-01 : f32
    %183 = vector.broadcast %cst_18 : f32 to vector<1x1xf32>
    %184 = arith.mulf %182, %183 : vector<1x1xf32>
    %185 = arith.mulf %180, %180 : vector<1x128xf32>
    %cst_19 = arith.constant dense<0.000000e+00> : vector<1xf32>
    %186 = vector.multi_reduction <add>, %185, %cst_19 [1] : vector<1x128xf32> to vector<1xf32>
    %187 = vector.shape_cast %186 : vector<1xf32> to vector<1x1xf32>
    %cst_20 = arith.constant 1.250000e-01 : f32
    %188 = vector.broadcast %cst_20 : f32 to vector<1x1xf32>
    %189 = arith.mulf %187, %188 : vector<1x1xf32>
    %190 = arith.mulf %184, %184 : vector<1x1xf32>
    %191 = arith.subf %189, %190 : vector<1x1xf32>
    %cst_21 = arith.constant 0.000000e+00 : f32
    %192 = vector.broadcast %cst_21 : f32 to vector<1x1xf32>
    %193 = arith.maximumf %191, %192 : vector<1x1xf32>
    %c42 = arith.constant 42 : index
    %194 = memref.load %arg0[%c42] : memref<64xf32, #tpu.memory_space<smem>>
    %cst_22 = arith.constant 9.99999974E-6 : f32
    %195 = vector.broadcast %cst_22 : f32 to vector<1x1xf32>
    %196 = arith.addf %193, %195 : vector<1x1xf32>
    %197 = math.rsqrt %196 : vector<1x1xf32>
    %198 = vector.broadcast %194 : f32 to vector<1x1xf32>
    %199 = arith.mulf %198, %197 : vector<1x1xf32>
    %200 = vector.broadcast %184 : vector<1x1xf32> to vector<1x128xf32>
    %201 = arith.subf %180, %200 : vector<1x128xf32>
    %202 = vector.broadcast %199 : vector<1x1xf32> to vector<1x128xf32>
    %203 = arith.mulf %201, %202 : vector<1x128xf32>
    %c46 = arith.constant 46 : index
    %204 = memref.load %arg0[%c46] : memref<64xf32, #tpu.memory_space<smem>>
    %205 = vector.broadcast %204 : f32 to vector<1x128xf32>
    %206 = arith.addf %203, %205 : vector<1x128xf32>
    %cst_23 = arith.constant 0.000000e+00 : f32
    %207 = vector.broadcast %cst_23 : f32 to vector<1x128xf32>
    %208 = arith.maximumf %206, %207 : vector<1x128xf32>
    %cst_24 = arith.constant 0.000000e+00 : f32
    %209 = vector.broadcast %cst_24 : f32 to vector<1x128xf32>
    %210 = arith.select %3, %208, %209 : vector<1x128xi1>, vector<1x128xf32>
    %c3 = arith.constant 3 : index
    %211 = memref.load %arg0[%c3] : memref<64xf32, #tpu.memory_space<smem>>
    %212 = vector.extract_strided_slice %0 {offsets = [0, 0], sizes = [1, 128], strides = [1, 1]} : vector<8x128xf32> to vector<1x128xf32>
    %213 = vector.broadcast %211 : f32 to vector<1x128xf32>
    %214 = arith.mulf %213, %212 : vector<1x128xf32>
    %c7 = arith.constant 7 : index
    %215 = memref.load %arg0[%c7] : memref<64xf32, #tpu.memory_space<smem>>
    %216 = vector.extract_strided_slice %0 {offsets = [1, 0], sizes = [1, 128], strides = [1, 1]} : vector<8x128xf32> to vector<1x128xf32>
    %217 = vector.broadcast %215 : f32 to vector<1x128xf32>
    %218 = arith.mulf %217, %216 : vector<1x128xf32>
    %219 = arith.addf %214, %218 : vector<1x128xf32>
    %c11 = arith.constant 11 : index
    %220 = memref.load %arg0[%c11] : memref<64xf32, #tpu.memory_space<smem>>
    %221 = vector.extract_strided_slice %0 {offsets = [2, 0], sizes = [1, 128], strides = [1, 1]} : vector<8x128xf32> to vector<1x128xf32>
    %222 = vector.broadcast %220 : f32 to vector<1x128xf32>
    %223 = arith.mulf %222, %221 : vector<1x128xf32>
    %224 = arith.addf %219, %223 : vector<1x128xf32>
    %c15 = arith.constant 15 : index
    %225 = memref.load %arg0[%c15] : memref<64xf32, #tpu.memory_space<smem>>
    %226 = vector.extract_strided_slice %0 {offsets = [3, 0], sizes = [1, 128], strides = [1, 1]} : vector<8x128xf32> to vector<1x128xf32>
    %227 = vector.broadcast %225 : f32 to vector<1x128xf32>
    %228 = arith.mulf %227, %226 : vector<1x128xf32>
    %229 = arith.addf %224, %228 : vector<1x128xf32>
    %c19 = arith.constant 19 : index
    %230 = memref.load %arg0[%c19] : memref<64xf32, #tpu.memory_space<smem>>
    %231 = vector.extract_strided_slice %0 {offsets = [4, 0], sizes = [1, 128], strides = [1, 1]} : vector<8x128xf32> to vector<1x128xf32>
    %232 = vector.broadcast %230 : f32 to vector<1x128xf32>
    %233 = arith.mulf %232, %231 : vector<1x128xf32>
    %234 = arith.addf %229, %233 : vector<1x128xf32>
    %c23 = arith.constant 23 : index
    %235 = memref.load %arg0[%c23] : memref<64xf32, #tpu.memory_space<smem>>
    %236 = vector.extract_strided_slice %0 {offsets = [5, 0], sizes = [1, 128], strides = [1, 1]} : vector<8x128xf32> to vector<1x128xf32>
    %237 = vector.broadcast %235 : f32 to vector<1x128xf32>
    %238 = arith.mulf %237, %236 : vector<1x128xf32>
    %239 = arith.addf %234, %238 : vector<1x128xf32>
    %c27 = arith.constant 27 : index
    %240 = memref.load %arg0[%c27] : memref<64xf32, #tpu.memory_space<smem>>
    %241 = vector.extract_strided_slice %0 {offsets = [6, 0], sizes = [1, 128], strides = [1, 1]} : vector<8x128xf32> to vector<1x128xf32>
    %242 = vector.broadcast %240 : f32 to vector<1x128xf32>
    %243 = arith.mulf %242, %241 : vector<1x128xf32>
    %244 = arith.addf %239, %243 : vector<1x128xf32>
    %c31 = arith.constant 31 : index
    %245 = memref.load %arg0[%c31] : memref<64xf32, #tpu.memory_space<smem>>
    %246 = vector.extract_strided_slice %0 {offsets = [7, 0], sizes = [1, 128], strides = [1, 1]} : vector<8x128xf32> to vector<1x128xf32>
    %247 = vector.broadcast %245 : f32 to vector<1x128xf32>
    %248 = arith.mulf %247, %246 : vector<1x128xf32>
    %249 = arith.addf %244, %248 : vector<1x128xf32>
    %cst_25 = arith.constant dense<0.000000e+00> : vector<1xf32>
    %250 = vector.multi_reduction <add>, %249, %cst_25 [1] : vector<1x128xf32> to vector<1xf32>
    %251 = vector.shape_cast %250 : vector<1xf32> to vector<1x1xf32>
    %cst_26 = arith.constant 1.250000e-01 : f32
    %252 = vector.broadcast %cst_26 : f32 to vector<1x1xf32>
    %253 = arith.mulf %251, %252 : vector<1x1xf32>
    %254 = arith.mulf %249, %249 : vector<1x128xf32>
    %cst_27 = arith.constant dense<0.000000e+00> : vector<1xf32>
    %255 = vector.multi_reduction <add>, %254, %cst_27 [1] : vector<1x128xf32> to vector<1xf32>
    %256 = vector.shape_cast %255 : vector<1xf32> to vector<1x1xf32>
    %cst_28 = arith.constant 1.250000e-01 : f32
    %257 = vector.broadcast %cst_28 : f32 to vector<1x1xf32>
    %258 = arith.mulf %256, %257 : vector<1x1xf32>
    %259 = arith.mulf %253, %253 : vector<1x1xf32>
    %260 = arith.subf %258, %259 : vector<1x1xf32>
    %cst_29 = arith.constant 0.000000e+00 : f32
    %261 = vector.broadcast %cst_29 : f32 to vector<1x1xf32>
    %262 = arith.maximumf %260, %261 : vector<1x1xf32>
    %c43 = arith.constant 43 : index
    %263 = memref.load %arg0[%c43] : memref<64xf32, #tpu.memory_space<smem>>
    %cst_30 = arith.constant 9.99999974E-6 : f32
    %264 = vector.broadcast %cst_30 : f32 to vector<1x1xf32>
    %265 = arith.addf %262, %264 : vector<1x1xf32>
    %266 = math.rsqrt %265 : vector<1x1xf32>
    %267 = vector.broadcast %263 : f32 to vector<1x1xf32>
    %268 = arith.mulf %267, %266 : vector<1x1xf32>
    %269 = vector.broadcast %253 : vector<1x1xf32> to vector<1x128xf32>
    %270 = arith.subf %249, %269 : vector<1x128xf32>
    %271 = vector.broadcast %268 : vector<1x1xf32> to vector<1x128xf32>
    %272 = arith.mulf %270, %271 : vector<1x128xf32>
    %c47 = arith.constant 47 : index
    %273 = memref.load %arg0[%c47] : memref<64xf32, #tpu.memory_space<smem>>
    %274 = vector.broadcast %273 : f32 to vector<1x128xf32>
    %275 = arith.addf %272, %274 : vector<1x128xf32>
    %cst_31 = arith.constant 0.000000e+00 : f32
    %276 = vector.broadcast %cst_31 : f32 to vector<1x128xf32>
    %277 = arith.maximumf %275, %276 : vector<1x128xf32>
    %cst_32 = arith.constant 0.000000e+00 : f32
    %278 = vector.broadcast %cst_32 : f32 to vector<1x128xf32>
    %279 = arith.select %3, %277, %278 : vector<1x128xi1>, vector<1x128xf32>
    %c32 = arith.constant 32 : index
    %280 = memref.load %arg0[%c32] : memref<64xf32, #tpu.memory_space<smem>>
    %281 = vector.broadcast %280 : f32 to vector<1x128xf32>
    %282 = arith.mulf %281, %72 : vector<1x128xf32>
    %c34 = arith.constant 34 : index
    %283 = memref.load %arg0[%c34] : memref<64xf32, #tpu.memory_space<smem>>
    %284 = vector.broadcast %283 : f32 to vector<1x128xf32>
    %285 = arith.mulf %284, %141 : vector<1x128xf32>
    %286 = arith.addf %282, %285 : vector<1x128xf32>
    %c36 = arith.constant 36 : index
    %287 = memref.load %arg0[%c36] : memref<64xf32, #tpu.memory_space<smem>>
    %288 = vector.broadcast %287 : f32 to vector<1x128xf32>
    %289 = arith.mulf %288, %210 : vector<1x128xf32>
    %290 = arith.addf %286, %289 : vector<1x128xf32>
    %c38 = arith.constant 38 : index
    %291 = memref.load %arg0[%c38] : memref<64xf32, #tpu.memory_space<smem>>
    %292 = vector.broadcast %291 : f32 to vector<1x128xf32>
    %293 = arith.mulf %292, %279 : vector<1x128xf32>
    %294 = arith.addf %290, %293 : vector<1x128xf32>
    %cst_33 = arith.constant dense<0.000000e+00> : vector<1xf32>
    %295 = vector.multi_reduction <add>, %294, %cst_33 [1] : vector<1x128xf32> to vector<1xf32>
    %296 = vector.shape_cast %295 : vector<1xf32> to vector<1x1xf32>
    %cst_34 = arith.constant 1.250000e-01 : f32
    %297 = vector.broadcast %cst_34 : f32 to vector<1x1xf32>
    %298 = arith.mulf %296, %297 : vector<1x1xf32>
    %299 = arith.mulf %294, %294 : vector<1x128xf32>
    %cst_35 = arith.constant dense<0.000000e+00> : vector<1xf32>
    %300 = vector.multi_reduction <add>, %299, %cst_35 [1] : vector<1x128xf32> to vector<1xf32>
    %301 = vector.shape_cast %300 : vector<1xf32> to vector<1x1xf32>
    %cst_36 = arith.constant 1.250000e-01 : f32
    %302 = vector.broadcast %cst_36 : f32 to vector<1x1xf32>
    %303 = arith.mulf %301, %302 : vector<1x1xf32>
    %304 = arith.mulf %298, %298 : vector<1x1xf32>
    %305 = arith.subf %303, %304 : vector<1x1xf32>
    %cst_37 = arith.constant 0.000000e+00 : f32
    %306 = vector.broadcast %cst_37 : f32 to vector<1x1xf32>
    %307 = arith.maximumf %305, %306 : vector<1x1xf32>
    %c48 = arith.constant 48 : index
    %308 = memref.load %arg0[%c48] : memref<64xf32, #tpu.memory_space<smem>>
    %cst_38 = arith.constant 9.99999974E-6 : f32
    %309 = vector.broadcast %cst_38 : f32 to vector<1x1xf32>
    %310 = arith.addf %307, %309 : vector<1x1xf32>
    %311 = math.rsqrt %310 : vector<1x1xf32>
    %312 = vector.broadcast %308 : f32 to vector<1x1xf32>
    %313 = arith.mulf %312, %311 : vector<1x1xf32>
    %314 = vector.broadcast %313 : vector<1x1xf32> to vector<1x128xf32>
    %315 = arith.mulf %294, %314 : vector<1x128xf32>
    %cst_39 = arith.constant -1.000000e+30 : f32
    %316 = vector.broadcast %cst_39 : f32 to vector<1x128xf32>
    %317 = arith.select %3, %315, %316 : vector<1x128xi1>, vector<1x128xf32>
    %cst_40 = arith.constant dense<0xFF800000> : vector<1xf32>
    %318 = vector.multi_reduction <maximumf>, %317, %cst_40 [1] : vector<1x128xf32> to vector<1xf32>
    %319 = vector.shape_cast %318 : vector<1xf32> to vector<1x1xf32>
    %320 = vector.broadcast %319 : vector<1x1xf32> to vector<1x128xf32>
    %321 = arith.subf %317, %320 : vector<1x128xf32>
    %322 = math.exp %321 : vector<1x128xf32>
    %cst_41 = arith.constant dense<0.000000e+00> : vector<1xf32>
    %323 = vector.multi_reduction <add>, %322, %cst_41 [1] : vector<1x128xf32> to vector<1xf32>
    %324 = vector.shape_cast %323 : vector<1xf32> to vector<1x1xf32>
    %325 = vector.broadcast %324 : vector<1x1xf32> to vector<1x128xf32>
    %326 = arith.divf %322, %325 : vector<1x128xf32>
    %c33 = arith.constant 33 : index
    %327 = memref.load %arg0[%c33] : memref<64xf32, #tpu.memory_space<smem>>
    %328 = vector.broadcast %327 : f32 to vector<1x128xf32>
    %329 = arith.mulf %328, %72 : vector<1x128xf32>
    %c35 = arith.constant 35 : index
    %330 = memref.load %arg0[%c35] : memref<64xf32, #tpu.memory_space<smem>>
    %331 = vector.broadcast %330 : f32 to vector<1x128xf32>
    %332 = arith.mulf %331, %141 : vector<1x128xf32>
    %333 = arith.addf %329, %332 : vector<1x128xf32>
    %c37 = arith.constant 37 : index
    %334 = memref.load %arg0[%c37] : memref<64xf32, #tpu.memory_space<smem>>
    %335 = vector.broadcast %334 : f32 to vector<1x128xf32>
    %336 = arith.mulf %335, %210 : vector<1x128xf32>
    %337 = arith.addf %333, %336 : vector<1x128xf32>
    %c39 = arith.constant 39 : index
    %338 = memref.load %arg0[%c39] : memref<64xf32, #tpu.memory_space<smem>>
    %339 = vector.broadcast %338 : f32 to vector<1x128xf32>
    %340 = arith.mulf %339, %279 : vector<1x128xf32>
    %341 = arith.addf %337, %340 : vector<1x128xf32>
    %cst_42 = arith.constant dense<0.000000e+00> : vector<1xf32>
    %342 = vector.multi_reduction <add>, %341, %cst_42 [1] : vector<1x128xf32> to vector<1xf32>
    %343 = vector.shape_cast %342 : vector<1xf32> to vector<1x1xf32>
    %cst_43 = arith.constant 1.250000e-01 : f32
    %344 = vector.broadcast %cst_43 : f32 to vector<1x1xf32>
    %345 = arith.mulf %343, %344 : vector<1x1xf32>
    %346 = arith.mulf %341, %341 : vector<1x128xf32>
    %cst_44 = arith.constant dense<0.000000e+00> : vector<1xf32>
    %347 = vector.multi_reduction <add>, %346, %cst_44 [1] : vector<1x128xf32> to vector<1xf32>
    %348 = vector.shape_cast %347 : vector<1xf32> to vector<1x1xf32>
    %cst_45 = arith.constant 1.250000e-01 : f32
    %349 = vector.broadcast %cst_45 : f32 to vector<1x1xf32>
    %350 = arith.mulf %348, %349 : vector<1x1xf32>
    %351 = arith.mulf %345, %345 : vector<1x1xf32>
    %352 = arith.subf %350, %351 : vector<1x1xf32>
    %cst_46 = arith.constant 0.000000e+00 : f32
    %353 = vector.broadcast %cst_46 : f32 to vector<1x1xf32>
    %354 = arith.maximumf %352, %353 : vector<1x1xf32>
    %c49 = arith.constant 49 : index
    %355 = memref.load %arg0[%c49] : memref<64xf32, #tpu.memory_space<smem>>
    %cst_47 = arith.constant 9.99999974E-6 : f32
    %356 = vector.broadcast %cst_47 : f32 to vector<1x1xf32>
    %357 = arith.addf %354, %356 : vector<1x1xf32>
    %358 = math.rsqrt %357 : vector<1x1xf32>
    %359 = vector.broadcast %355 : f32 to vector<1x1xf32>
    %360 = arith.mulf %359, %358 : vector<1x1xf32>
    %361 = vector.broadcast %360 : vector<1x1xf32> to vector<1x128xf32>
    %362 = arith.mulf %341, %361 : vector<1x128xf32>
    %cst_48 = arith.constant -1.000000e+30 : f32
    %363 = vector.broadcast %cst_48 : f32 to vector<1x128xf32>
    %364 = arith.select %3, %362, %363 : vector<1x128xi1>, vector<1x128xf32>
    %cst_49 = arith.constant dense<0xFF800000> : vector<1xf32>
    %365 = vector.multi_reduction <maximumf>, %364, %cst_49 [1] : vector<1x128xf32> to vector<1xf32>
    %366 = vector.shape_cast %365 : vector<1xf32> to vector<1x1xf32>
    %367 = vector.broadcast %366 : vector<1x1xf32> to vector<1x128xf32>
    %368 = arith.subf %364, %367 : vector<1x128xf32>
    %369 = math.exp %368 : vector<1x128xf32>
    %cst_50 = arith.constant dense<0.000000e+00> : vector<1xf32>
    %370 = vector.multi_reduction <add>, %369, %cst_50 [1] : vector<1x128xf32> to vector<1xf32>
    %371 = vector.shape_cast %370 : vector<1xf32> to vector<1x1xf32>
    %372 = vector.broadcast %371 : vector<1x1xf32> to vector<1x128xf32>
    %373 = arith.divf %369, %372 : vector<1x128xf32>
    %374 = tpu.concatenate %326, %373 in 0 : vector<1x128xf32>, vector<1x128xf32> -> vector<2x128xf32>
    %c0_51 = arith.constant 0 : index
    %c0_52 = arith.constant 0 : index
    %375 = vector.load %arg2[%c0_51, %c0_52] : memref<2x128xf32, #tpu.memory_space<vmem>>, vector<2x128xf32>
    tpu.vector_store %arg2[%c0_51, %c0_52], %374 {strides = array<i32>} : memref<2x128xf32, #tpu.memory_space<vmem>>, vector<2x128xf32>,
    return
  }
}

</mosaic_0001>

<llo_original>
// kernel: tpu_custom_call.1
$region0: #{tpu_custom_call.1}
  #allocation0 [shape = 'u32[]', space=smem, size = 0x4, offset = 0x4, fixed_abs, tag = 'smem constant byte address 0x4 - core index']
  #allocation1 [shape = 'u32[72,128]{1,0:T(1,128)}', space=vmem, size = 0x9000, scoped, tag = 'internal scratch']
  %s0 = inlined_call_operand.hbm [shape: f32[64], index: 0, kind: input, shape index: {}]
  %s1 = inlined_call_operand.hbm [shape: f32[8,128], index: 1, kind: input, shape index: {}]
  %s2 = inlined_call_operand.hbm [shape: f32[2,128], index: 2, kind: output, shape index: {}]
  %s3 = sld [smem:[#allocation0]]
  $region26: #{tpu_custom_call.1} parent=0
    _
  %s5 = ssub.s32 1, %s3
  %s6 = scalar_select 0, %s5, %s3
  $region1: #{tpu_custom_call.1} parent=0
    #allocation2 [shape = 'u8[512]{0}', space=smem, size = 0x200, scoped, tag = 'input window, operand 0, single buffered']
    #allocation3 [shape = 's32[1]{0}', space=sflag, size = 0x4, scoped, tag = 'scoped memory for tpu_custom_call.1']
    #allocation4 [shape = 's32[1]{0}', space=sflag, size = 0x4, scoped, tag = 'scoped memory for tpu_custom_call.1']
    #allocation5 [shape = 's32[1]{0}', space=sflag, size = 0x4, scoped, tag = 'scoped memory for tpu_custom_call.1']
    #allocation6 [shape = 'u8[4096]{0}', space=vmem, size = 0x1000, scoped, tag = 'input window, operand 1, single buffered']
    #allocation7 [shape = 'u8[1024]{0}', space=vmem, size = 0x400, scoped, tag = 'output window, operand 0, single buffered']
    %7 = vsyncpa [#allocation5], 0
    %8 = vsyncpa [#allocation3], 0
    %9 = vsyncpa [#allocation4], 0
    // Predicated region
    $region2: #{tpu_custom_call.1} parent=1 // pred_check
      _
    $region3: #{tpu_custom_call.1} parent=1 // pred_check_branch
      %11 = sbr.rel (0) target = $region5
    $region4: #{tpu_custom_call.1} parent=1 // pred_region
      %13 = vsyncadd [#allocation5], 0
      %s15 = sshll.u32 %s0, 4
      %s16 = int_to_ptr.hbm [resolvable:$true] %s15
      %18 = dma.hbm_to_smem %s16, 16, [#allocation2], [#allocation5]
    $region5: #{tpu_custom_call.1} parent=1 // pred_fallthru
      _
    // Predicated region
    $region6: #{tpu_custom_call.1} parent=1 // pred_check
      _
    $region7: #{tpu_custom_call.1} parent=1 // pred_check_branch
      %20 = sbr.rel (0) target = $region9
    $region8: #{tpu_custom_call.1} parent=1 // pred_region
      %22 = vsyncadd [#allocation3], 0
      %s24 = sshll.u32 %s1, 4
      %s25 = int_to_ptr.hbm [resolvable:$true] %s24
      %s26 = sshll.u32 [#allocation6], 4
      %s27 = int_to_ptr.vmem [resolvable:$true] %s26
      %29 = dma.hbm_to_vmem [thread:$0]  %s25, 128, %s27, [#allocation3]
    $region9: #{tpu_custom_call.1} parent=1 // pred_fallthru
      _
    // Predicated region
    $region10: #{tpu_custom_call.1} parent=1 // pred_check
      _
    $region11: #{tpu_custom_call.1} parent=1 // pred_check_branch
      %31 = sbr.rel (0) target = $region13
    $region12: #{tpu_custom_call.1} parent=1 // pred_region
      %33 = dma.done [#allocation5], 16
    $region13: #{tpu_custom_call.1} parent=1 // pred_fallthru
      _
    // Predicated region
    $region14: #{tpu_custom_call.1} parent=1 // pred_check
      _
    $region15: #{tpu_custom_call.1} parent=1 // pred_check_branch
      %35 = sbr.rel (0) target = $region17
    $region16: #{tpu_custom_call.1} parent=1 // pred_region
      %37 = dma.done [#allocation3], 128
    $region17: #{tpu_custom_call.1} parent=1 // pred_fallthru
      _
    %38 = sfence
    %v39 = vld [vmem:[#allocation6] sm:$0xff]
    %v40 = vlaneseq
    %v41 = vand.u32 %v40, 127
    %vm42 = vcmp.lt.s32.totalorder %v41, 8
    %s43 = sld [smem:[#allocation2]]
    %v44 = vstv %s43
    %v45 = vmul.f32 %v44, %v39
    %s46 = sld [smem:[#allocation2 + $0x4]]
    %v47 = vstv %s46
    %v48 = vmul.f32 %v47, %v39
    %v50 = vrot.slane %v48, 1
    %v52 = vadd.f32 %v45, %v50
    %s53 = sld [smem:[#allocation2 + $0x8]]
    %v54 = vstv %s53
    %v55 = vmul.f32 %v54, %v39
    %v57 = vrot.slane %v55, 2
    %v59 = vadd.f32 %v52, %v57
    %s60 = sld [smem:[#allocation2 + $0xc]]
    %v61 = vstv %s60
    %v62 = vmul.f32 %v61, %v39
    %v64 = vrot.slane %v62, 3
    %v66 = vadd.f32 %v59, %v64
    %s67 = sld [smem:[#allocation2 + $0x10]]
    %v68 = vstv %s67
    %v69 = vmul.f32 %v68, %v39
    %v71 = vrot.slane %v69, 4
    %v73 = vadd.f32 %v66, %v71
    %s74 = sld [smem:[#allocation2 + $0x14]]
    %v75 = vstv %s74
    %v76 = vmul.f32 %v75, %v39
    %v78 = vrot.slane %v76, 5
    %v80 = vadd.f32 %v73, %v78
    %s81 = sld [smem:[#allocation2 + $0x18]]
    %v82 = vstv %s81
    %v83 = vmul.f32 %v82, %v39
    %v85 = vrot.slane %v83, 6
    %v87 = vadd.f32 %v80, %v85
    %s88 = sld [smem:[#allocation2 + $0x1c]]
    %v89 = vstv %s88
    %v90 = vmul.f32 %v89, %v39
    %v92 = vrot.slane %v90, 7
    %v94 = vadd.f32 %v87, %v92
    %vm95 = vcmask 1040384
    %v96 = vsel %vm95, %v94, 0.0
    %97 = vadd.xlane.f32.xlu0 %v96
    %v98 = vpop.xlane.xlu0 %97
    %v99 = vmul.f32 %v98, 0.125
    %v100 = vmul.f32 %v94, %v94
    %v101 = vsel %vm95, %v100, 0.0
    %102 = vadd.xlane.f32.xlu0 %v101
    %v103 = vpop.xlane.xlu0 %102
    %v104 = vmul.f32 %v103, 0.125
    %v105 = vmul.f32 %v99, %v99
    %v106 = vsub.f32 %v104, %v105
    %v107 = vmax.f32 %v106, 0.0
    %s108 = sld [smem:[#allocation2 + $0x28]]
    %v109 = vadd.f32 %v107, 1e-05
    %v110 = vrsqrt.pop %v109
    %v111 = vmul.f32 %v110, %v109
    %v112 = vmul.f32 %v111, %v110
    %v113 = vmul.f32 0.5, %v112
    %v114 = vsub.f32 1.5, %v113
    %v115 = vmul.f32 %v110, %v114
    %vm116 = vweird.f32 %v109
    %vm117 = vweird.f32 %v110
    %vm118 = vmor %vm116, %vm117
    %v119 = vsel %vm118, %v110, %v115
    %v120 = vstv %s108
    %v121 = vmul.f32 %v120, %v119
    %v122 = vsub.f32 %v94, %v99
    %v123 = vmul.f32 %v122, %v121
    %s124 = sld [smem:[#allocation2 + $0x2c]]
    %v125 = vstv %s124
    %v126 = vadd.f32 %v123, %v125
    %v127 = vmax.f32 %v126, 0.0
    %v128 = vsel %vm42, %v127, 0.0
    %s129 = sld [smem:[#allocation2 + $0x1]]
    %v130 = vstv %s129
    %v131 = vmul.f32 %v130, %v39
    %s132 = sld [smem:[#allocation2 + $0x5]]
    %v133 = vstv %s132
    %v134 = vmul.f32 %v133, %v39
    %v136 = vrot.slane %v134, 1
    %v138 = vadd.f32 %v131, %v136
    %s139 = sld [smem:[#allocation2 + $0x9]]
    %v140 = vstv %s139
    %v141 = vmul.f32 %v140, %v39
    %v143 = vrot.slane %v141, 2
    %v145 = vadd.f32 %v138, %v143
    %s146 = sld [smem:[#allocation2 + $0xd]]
    %v147 = vstv %s146
    %v148 = vmul.f32 %v147, %v39
    %v150 = vrot.slane %v148, 3
    %v152 = vadd.f32 %v145, %v150
    %s153 = sld [smem:[#allocation2 + $0x11]]
    %v154 = vstv %s153
    %v155 = vmul.f32 %v154, %v39
    %v157 = vrot.slane %v155, 4
    %v159 = vadd.f32 %v152, %v157
    %s160 = sld [smem:[#allocation2 + $0x15]]
    %v161 = vstv %s160
    %v162 = vmul.f32 %v161, %v39
    %v164 = vrot.slane %v162, 5
    %v166 = vadd.f32 %v159, %v164
    %s167 = sld [smem:[#allocation2 + $0x19]]
    %v168 = vstv %s167
    %v169 = vmul.f32 %v168, %v39
    %v171 = vrot.slane %v169, 6
    %v173 = vadd.f32 %v166, %v171
    %s174 = sld [smem:[#allocation2 + $0x1d]]
    %v175 = vstv %s174
    %v176 = vmul.f32 %v175, %v39
    %v178 = vrot.slane %v176, 7
    %v180 = vadd.f32 %v173, %v178
    %v181 = vsel %vm95, %v180, 0.0
    %182 = vadd.xlane.f32.xlu0 %v181
    %v183 = vpop.xlane.xlu0 %182
    %v184 = vmul.f32 %v183, 0.125
    %v185 = vmul.f32 %v180, %v180
    %v186 = vsel %vm95, %v185, 0.0
    %187 = vadd.xlane.f32.xlu0 %v186
    %v188 = vpop.xlane.xlu0 %187
    %v189 = vmul.f32 %v188, 0.125
    %v190 = vmul.f32 %v184, %v184
    %v191 = vsub.f32 %v189, %v190
    %v192 = vmax.f32 %v191, 0.0
    %s193 = sld [smem:[#allocation2 + $0x29]]
    %v194 = vadd.f32 %v192, 1e-05
    %v195 = vrsqrt.pop %v194
    %v196 = vmul.f32 %v195, %v194
    %v197 = vmul.f32 %v196, %v195
    %v198 = vmul.f32 0.5, %v197
    %v199 = vsub.f32 1.5, %v198
    %v200 = vmul.f32 %v195, %v199
    %vm201 = vweird.f32 %v194
    %vm202 = vweird.f32 %v195
    %vm203 = vmor %vm201, %vm202
    %v204 = vsel %vm203, %v195, %v200
    %v205 = vstv %s193
    %v206 = vmul.f32 %v205, %v204
    %v207 = vsub.f32 %v180, %v184
    %v208 = vmul.f32 %v207, %v206
    %s209 = sld [smem:[#allocation2 + $0x2d]]
    %v210 = vstv %s209
    %v211 = vadd.f32 %v208, %v210
    %v212 = vmax.f32 %v211, 0.0
    %v213 = vsel %vm42, %v212, 0.0
    %s214 = sld [smem:[#allocation2 + $0x2]]
    %v215 = vstv %s214
    %v216 = vmul.f32 %v215, %v39
    %s217 = sld [smem:[#allocation2 + $0x6]]
    %v218 = vstv %s217
    %v219 = vmul.f32 %v218, %v39
    %v221 = vrot.slane %v219, 1
    %v223 = vadd.f32 %v216, %v221
    %s224 = sld [smem:[#allocation2 + $0xa]]
    %v225 = vstv %s224
    %v226 = vmul.f32 %v225, %v39
    %v228 = vrot.slane %v226, 2
    %v230 = vadd.f32 %v223, %v228
    %s231 = sld [smem:[#allocation2 + $0xe]]
    %v232 = vstv %s231
    %v233 = vmul.f32 %v232, %v39
    %v235 = vrot.slane %v233, 3
    %v237 = vadd.f32 %v230, %v235
    %s238 = sld [smem:[#allocation2 + $0x12]]
    %v239 = vstv %s238
    %v240 = vmul.f32 %v239, %v39
    %v242 = vrot.slane %v240, 4
    %v244 = vadd.f32 %v237, %v242
    %s245 = sld [smem:[#allocation2 + $0x16]]
    %v246 = vstv %s245
    %v247 = vmul.f32 %v246, %v39
    %v249 = vrot.slane %v247, 5
    %v251 = vadd.f32 %v244, %v249
    %s252 = sld [smem:[#allocation2 + $0x1a]]
    %v253 = vstv %s252
    %v254 = vmul.f32 %v253, %v39
    %v256 = vrot.slane %v254, 6
    %v258 = vadd.f32 %v251, %v256
    %s259 = sld [smem:[#allocation2 + $0x1e]]
    %v260 = vstv %s259
    %v261 = vmul.f32 %v260, %v39
    %v263 = vrot.slane %v261, 7
    %v265 = vadd.f32 %v258, %v263
    %v266 = vsel %vm95, %v265, 0.0
    %267 = vadd.xlane.f32.xlu0 %v266
    %v268 = vpop.xlane.xlu0 %267
    %v269 = vmul.f32 %v268, 0.125
    %v270 = vmul.f32 %v265, %v265
    %v271 = vsel %vm95, %v270, 0.0
    %272 = vadd.xlane.f32.xlu0 %v271
    %v273 = vpop.xlane.xlu0 %272
    %v274 = vmul.f32 %v273, 0.125
    %v275 = vmul.f32 %v269, %v269
    %v276 = vsub.f32 %v274, %v275
    %v277 = vmax.f32 %v276, 0.0
    %s278 = sld [smem:[#allocation2 + $0x2a]]
    %v279 = vadd.f32 %v277, 1e-05
    %v280 = vrsqrt.pop %v279
    %v281 = vmul.f32 %v280, %v279
    %v282 = vmul.f32 %v281, %v280
    %v283 = vmul.f32 0.5, %v282
    %v284 = vsub.f32 1.5, %v283
    %v285 = vmul.f32 %v280, %v284
    %vm286 = vweird.f32 %v279
    %vm287 = vweird.f32 %v280
    %vm288 = vmor %vm286, %vm287
    %v289 = vsel %vm288, %v280, %v285
    %v290 = vstv %s278
    %v291 = vmul.f32 %v290, %v289
    %v292 = vsub.f32 %v265, %v269
    %v293 = vmul.f32 %v292, %v291
    %s294 = sld [smem:[#allocation2 + $0x2e]]
    %v295 = vstv %s294
    %v296 = vadd.f32 %v293, %v295
    %v297 = vmax.f32 %v296, 0.0
    %v298 = vsel %vm42, %v297, 0.0
    %s299 = sld [smem:[#allocation2 + $0x3]]
    %v300 = vstv %s299
    %v301 = vmul.f32 %v300, %v39
    %s302 = sld [smem:[#allocation2 + $0x7]]
    %v303 = vstv %s302
    %v304 = vmul.f32 %v303, %v39
    %v306 = vrot.slane %v304, 1
    %v308 = vadd.f32 %v301, %v306
    %s309 = sld [smem:[#allocation2 + $0xb]]
    %v310 = vstv %s309
    %v311 = vmul.f32 %v310, %v39
    %v313 = vrot.slane %v311, 2
    %v315 = vadd.f32 %v308, %v313
    %s316 = sld [smem:[#allocation2 + $0xf]]
    %v317 = vstv %s316
    %v318 = vmul.f32 %v317, %v39
    %v320 = vrot.slane %v318, 3
    %v322 = vadd.f32 %v315, %v320
    %s323 = sld [smem:[#allocation2 + $0x13]]
    %v324 = vstv %s323
    %v325 = vmul.f32 %v324, %v39
    %v327 = vrot.slane %v325, 4
    %v329 = vadd.f32 %v322, %v327
    %s330 = sld [smem:[#allocation2 + $0x17]]
    %v331 = vstv %s330
    %v332 = vmul.f32 %v331, %v39
    %v334 = vrot.slane %v332, 5
    %v336 = vadd.f32 %v329, %v334
    %s337 = sld [smem:[#allocation2 + $0x1b]]
    %v338 = vstv %s337
    %v339 = vmul.f32 %v338, %v39
    %v341 = vrot.slane %v339, 6
    %v343 = vadd.f32 %v336, %v341
    %s344 = sld [smem:[#allocation2 + $0x1f]]
    %v345 = vstv %s344
    %v346 = vmul.f32 %v345, %v39
    %v348 = vrot.slane %v346, 7
    %v350 = vadd.f32 %v343, %v348
    %v351 = vsel %vm95, %v350, 0.0
    %352 = vadd.xlane.f32.xlu0 %v351
    %v353 = vpop.xlane.xlu0 %352
    %v354 = vmul.f32 %v353, 0.125
    %v355 = vmul.f32 %v350, %v350
    %v356 = vsel %vm95, %v355, 0.0
    %357 = vadd.xlane.f32.xlu0 %v356
    %v358 = vpop.xlane.xlu0 %357
    %v359 = vmul.f32 %v358, 0.125
    %v360 = vmul.f32 %v354, %v354
    %v361 = vsub.f32 %v359, %v360
    %v362 = vmax.f32 %v361, 0.0
    %s363 = sld [smem:[#allocation2 + $0x2b]]
    %v364 = vadd.f32 %v362, 1e-05
    %v365 = vrsqrt.pop %v364
    %v366 = vmul.f32 %v365, %v364
    %v367 = vmul.f32 %v366, %v365
    %v368 = vmul.f32 0.5, %v367
    %v369 = vsub.f32 1.5, %v368
    %v370 = vmul.f32 %v365, %v369
    %vm371 = vweird.f32 %v364
    %vm372 = vweird.f32 %v365
    %vm373 = vmor %vm371, %vm372
    %v374 = vsel %vm373, %v365, %v370
    %v375 = vstv %s363
    %v376 = vmul.f32 %v375, %v374
    %v377 = vsub.f32 %v350, %v354
    %v378 = vmul.f32 %v377, %v376
    %s379 = sld [smem:[#allocation2 + $0x2f]]
    %v380 = vstv %s379
    %v381 = vadd.f32 %v378, %v380
    %v382 = vmax.f32 %v381, 0.0
    %v383 = vsel %vm42, %v382, 0.0
    %s384 = sld [smem:[#allocation2 + $0x20]]
    %v385 = vstv %s384
    %v386 = vmul.f32 %v385, %v128
    %s387 = sld [smem:[#allocation2 + $0x22]]
    %v388 = vstv %s387
    %v389 = vmul.f32 %v388, %v213
    %v390 = vadd.f32 %v386, %v389
    %s391 = sld [smem:[#allocation2 + $0x24]]
    %v392 = vstv %s391
    %v393 = vmul.f32 %v392, %v298
    %v394 = vadd.f32 %v390, %v393
    %s395 = sld [smem:[#allocation2 + $0x26]]
    %v396 = vstv %s395
    %v397 = vmul.f32 %v396, %v383
    %v398 = vadd.f32 %v394, %v397
    %v399 = vsel %vm95, %v398, 0.0
    %400 = vadd.xlane.f32.xlu0 %v399
    %v401 = vpop.xlane.xlu0 %400
    %v402 = vmul.f32 %v401, 0.125
    %v403 = vmul.f32 %v398, %v398
    %v404 = vsel %vm95, %v403, 0.0
    %405 = vadd.xlane.f32.xlu0 %v404
    %v406 = vpop.xlane.xlu0 %405
    %v407 = vmul.f32 %v406, 0.125
    %v408 = vmul.f32 %v402, %v402
    %v409 = vsub.f32 %v407, %v408
    %v410 = vmax.f32 %v409, 0.0
    %s411 = sld [smem:[#allocation2 + $0x30]]
    %v412 = vadd.f32 %v410, 1e-05
    %v413 = vrsqrt.pop %v412
    %v414 = vmul.f32 %v413, %v412
    %v415 = vmul.f32 %v414, %v413
    %v416 = vmul.f32 0.5, %v415
    %v417 = vsub.f32 1.5, %v416
    %v418 = vmul.f32 %v413, %v417
    %vm419 = vweird.f32 %v412
    %vm420 = vweird.f32 %v413
    %vm421 = vmor %vm419, %vm420
    %v422 = vsel %vm421, %v413, %v418
    %v423 = vstv %s411
    %v424 = vmul.f32 %v423, %v422
    %v425 = vmul.f32 %v398, %v424
    %v426 = vsel %vm42, %v425, -1e+30
    %v427 = vsel %vm95, %v426, -inf
    %428 = vmax.xlane.f32.xlu0 %v427
    %v429 = vpop.xlane.xlu0 %428
    %v430 = vsub.f32 %v426, %v429
    %v431 = vmul.f32 %v430, 1.442695
    %v432 = vpow.pop %v431
    %v433 = vsel %vm95, %v432, 0.0
    %434 = vadd.xlane.f32.xlu0 %v433
    %v435 = vpop.xlane.xlu0 %434
    %v436 = vrcp.pop %v435
    %v437 = vmul.f32 %v435, %v436
    %v438 = vsub.f32 1.0, %v437
    %v439 = vmul.f32 %v436, %v438
    %v440 = vadd.f32 %v436, %v439
    %vm441 = vweird.f32 %v435
    %vm442 = vweird.f32 %v436
    %vm443 = vmor %vm441, %vm442
    %v444 = vsel %vm443, %v436, %v440
    %v445 = vand.u32 2147483647, %v435
    %vm446 = vcmp.eq.f32.partialorder %v445, 8.507059e+37
    %v447 = vand.u32 %v435, 2147483648
    %v448 = vor.u32 1.1754944e-38, %v447
    %v449 = vsel %vm446, %v448, %v444
    %v450 = vmul.f32 %v432, %v449
    %s451 = sld [smem:[#allocation2 + $0x21]]
    %v452 = vstv %s451
    %v453 = vmul.f32 %v452, %v128
    %s454 = sld [smem:[#allocation2 + $0x23]]
    %v455 = vstv %s454
    %v456 = vmul.f32 %v455, %v213
    %v457 = vadd.f32 %v453, %v456
    %s458 = sld [smem:[#allocation2 + $0x25]]
    %v459 = vstv %s458
    %v460 = vmul.f32 %v459, %v298
    %v461 = vadd.f32 %v457, %v460
    %s462 = sld [smem:[#allocation2 + $0x27]]
    %v463 = vstv %s462
    %v464 = vmul.f32 %v463, %v383
    %v465 = vadd.f32 %v461, %v464
    %v466 = vsel %vm95, %v465, 0.0
    %467 = vadd.xlane.f32.xlu0 %v466
    %v468 = vpop.xlane.xlu0 %467
    %v469 = vmul.f32 %v468, 0.125
    %v470 = vmul.f32 %v465, %v465
    %v471 = vsel %vm95, %v470, 0.0
    %472 = vadd.xlane.f32.xlu0 %v471
    %v473 = vpop.xlane.xlu0 %472
    %v474 = vmul.f32 %v473, 0.125
    %v475 = vmul.f32 %v469, %v469
    %v476 = vsub.f32 %v474, %v475
    %v477 = vmax.f32 %v476, 0.0
    %s478 = sld [smem:[#allocation2 + $0x31]]
    %v479 = vadd.f32 %v477, 1e-05
    %v480 = vrsqrt.pop %v479
    %v481 = vmul.f32 %v480, %v479
    %v482 = vmul.f32 %v481, %v480
    %v483 = vmul.f32 0.5, %v482
    %v484 = vsub.f32 1.5, %v483
    %v485 = vmul.f32 %v480, %v484
    %vm486 = vweird.f32 %v479
    %vm487 = vweird.f32 %v480
    %vm488 = vmor %vm486, %vm487
    %v489 = vsel %vm488, %v480, %v485
    %v490 = vstv %s478
    %v491 = vmul.f32 %v490, %v489
    %v492 = vmul.f32 %v465, %v491
    %v493 = vsel %vm42, %v492, -1e+30
    %v494 = vsel %vm95, %v493, -inf
    %495 = vmax.xlane.f32.xlu0 %v494
    %v496 = vpop.xlane.xlu0 %495
    %v497 = vsub.f32 %v493, %v496
    %v498 = vmul.f32 %v497, 1.442695
    %v499 = vpow.pop %v498
    %v500 = vsel %vm95, %v499, 0.0
    %501 = vadd.xlane.f32.xlu0 %v500
    %v502 = vpop.xlane.xlu0 %501
    %v503 = vrcp.pop %v502
    %v504 = vmul.f32 %v502, %v503
    %v505 = vsub.f32 1.0, %v504
    %v506 = vmul.f32 %v503, %v505
    %v507 = vadd.f32 %v503, %v506
    %vm508 = vweird.f32 %v502
    %vm509 = vweird.f32 %v503
    %vm510 = vmor %vm508, %vm509
    %v511 = vsel %vm510, %v503, %v507
    %v512 = vand.u32 2147483647, %v502
    %vm513 = vcmp.eq.f32.partialorder %v512, 8.507059e+37
    %v514 = vand.u32 %v502, 2147483648
    %v515 = vor.u32 1.1754944e-38, %v514
    %v516 = vsel %vm513, %v515, %v511
    %v517 = vmul.f32 %v499, %v516
    %v519 = vrot.slane %v517, 7
    %v521 = vsel %vm95, %v450, %v519
    %522 = vst [vmem:[#allocation7] sm:$0x3] %v521
    // Predicated region
    $region18: #{tpu_custom_call.1} parent=1 // pred_check
      _
    $region19: #{tpu_custom_call.1} parent=1 // pred_check_branch
      %524 = sbr.rel (0) target = $region21
    $region20: #{tpu_custom_call.1} parent=1 // pred_region
      %526 = vsyncadd [#allocation4], 0
      %s528 = sshll.u32 [#allocation7], 4
      %s529 = int_to_ptr.vmem [resolvable:$true] %s528
      %s530 = sshll.u32 %s2, 4
      %s531 = int_to_ptr.hbm [resolvable:$true] %s530
      %533 = dma.vmem_to_hbm [thread:$0]  %s529, 32, %s531, [#allocation4]
    $region21: #{tpu_custom_call.1} parent=1 // pred_fallthru
      _
    // Predicated region
    $region22: #{tpu_custom_call.1} parent=1 // pred_check
      _
    $region23: #{tpu_custom_call.1} parent=1 // pred_check_branch
      %535 = sbr.rel (0) target = $region25
    $region24: #{tpu_custom_call.1} parent=1 // pred_region
      %537 = dma.done [#allocation4], 32
    $region25: #{tpu_custom_call.1} parent=1 // pred_fallthru
      _
    %538 = vsyncpa [#allocation3], 1
    %539 = vsyncpa [#allocation4], 1
    %540 = vsyncpa [#allocation5], 1

</llo_original>
